<compile_context>
chip_gen: v6e
topology: v6e:2x2x1
jax: 0.10.0
libtpu: 0.0.40
codegen_flags: <defaults>
</compile_context>

<pallas_src>
import functools

import jax
import jax.numpy as jnp
from jax import lax
from jax.experimental import pallas as pl
from jax.experimental.pallas import tpu as pltpu

DIMS = [64, 32, 16, 4, 1]  # hidden sizes from NN.__init__


def _round_up(n, m):
    return ((n + m - 1) // m) * m


def mlp_kernel(x_ref,
               w0_ref, b0_ref,
               w1_ref, b1_ref,
               w2_ref, b2_ref,
               w3_ref, b3_ref,
               w4t_ref, b4_ref,
               o_ref):
    """One batch tile, batch ends up on the lane axis.

    x_ref:   [tile_b, input_dim]  (natural layout, no wrapper transpose)
    w{i}:    [out_i, in_i]        (PyTorch orientation), b{i}: [out_i, 1]
    w4t_ref: [4, 1]               (final-layer weight, pre-transposed, VPU path)
    o_ref:   [1, tile_b]
    """
    # Layer 0: h0 = W0 · xᵀ — contract the input_dim axis of both operands
    # (equivalent to pl.dot trans_b=True). This is the on-chip re-orientation:
    # activations come out [64, tile_b] with batch on the 128-lane axis.
    h = lax.dot_general(
        w0_ref[...], x_ref[...],
        dimension_numbers=(((1,), (1,)), ((), ())),
        preferred_element_type=jnp.float32)
    h = jnp.maximum(h + b0_ref[...], 0.0)

    h = jnp.maximum(
        jnp.dot(w1_ref[...], h, preferred_element_type=jnp.float32) + b1_ref[...], 0.0)
    h = jnp.maximum(
        jnp.dot(w2_ref[...], h, preferred_element_type=jnp.float32) + b2_ref[...], 0.0)
    h = jnp.maximum(
        jnp.dot(w3_ref[...], h, preferred_element_type=jnp.float32) + b3_ref[...], 0.0)

    # 4 -> 1 final layer on the VPU/XLU: broadcast-multiply + sublane reduction
    # (avoids an MXU push/pop for a 1x4 contraction; in the noise either way).
    h = jnp.sum(w4t_ref[...] * h, axis=0, keepdims=True) + b4_ref[...]  # [1, tile_b]

    o_ref[...] = h.astype(o_ref.dtype)


def init_params(key, input_dim):
    """Same shapes as the PyTorch module.

    Weights: [out_features, in_features] (PyTorch orientation).
    Biases:  [out_features, 1] so they broadcast over the lane (batch) axis.
    """
    dims = [input_dim] + DIMS
    params = []
    for i in range(len(DIMS)):
        key, wk, bk = jax.random.split(key, 3)
        bound = 1.0 / (dims[i] ** 0.5)
        w = jax.random.uniform(wk, (dims[i + 1], dims[i]), jnp.float32, -bound, bound)
        b = jax.random.uniform(bk, (dims[i + 1], 1), jnp.float32, -bound, bound)
        params.append((w, b))
    return params


def _pick_tile(batch, tile_b):
    """Trace-time (static) batch-tile selection.

    * batch <= 256: single full-extent block (block dims == array dims; no
      padding or partial tiles at all).
    * otherwise: 256-aligned tile (MXU/lane friendly on all gens), capped so the
      grid has >= 2 steps — the "parallel" batch axis then shards across both
      TensorCores on v7x. The last block may be partial (write-masked).
    """
    if batch <= 256:
        return batch
    tile = _round_up(min(tile_b, batch), 256)
    if tile >= batch:
        tile = _round_up(pl.cdiv(batch, 2), 256)
    return tile


@functools.partial(jax.jit, static_argnames=("tile_b",))
def nn_forward(x, params, tile_b=4096):
    """Equivalent of NN.forward: x [batch, input_dim] -> [batch]."""
    batch, input_dim = x.shape
    tile = _pick_tile(batch, tile_b)
    grid = (pl.cdiv(batch, tile),)

    (w0, b0), (w1, b1), (w2, b2), (w3, b3), (w4, b4) = params
    flat = [w0, b0, w1, b1, w2, b2, w3, b3, w4.T, b4]            # w4.T: [4, 1]

    # x tiles over the batch (rows); every weight/bias is one full-array block
    # with a constant index map, so it stays resident across grid steps.
    in_specs = [pl.BlockSpec((tile, input_dim), lambda i: (i, 0))]
    for a in flat:
        in_specs.append(pl.BlockSpec(a.shape, lambda i: (0, 0)))

    out = pl.pallas_call(
        mlp_kernel,
        out_shape=jax.ShapeDtypeStruct((1, batch), jnp.float32),
        grid=grid,
        in_specs=in_specs,
        out_specs=pl.BlockSpec((1, tile), lambda i: (0, i)),     # lane-dense store
        compiler_params=pltpu.CompilerParams(
            dimension_semantics=("parallel",)),                  # both TCs on v7x
    )(x, *flat)

    return out[0]                                                # matches .squeeze(1)


def _reference(x, params):
    h = x
    for idx, (w, b) in enumerate(params):
        h = h @ w.T + b.T
        if idx < len(params) - 1:
            h = jnp.maximum(h, 0.0)
    return jnp.squeeze(h, axis=1)


if __name__ == "__main__":
    key = jax.random.PRNGKey(0)
    key, xk = jax.random.split(key)

    batch, input_dim = 16, 32
    x = jax.random.normal(xk, (batch, input_dim), jnp.float32)
    params = init_params(key, input_dim)

    # Small-shape check (single full-extent block).
    y = nn_forward(x, params)
    jax.block_until_ready(y)
    ref = _reference(x, params)
    assert y.shape == (batch,)
    assert jnp.allclose(y, ref, atol=2e-5, rtol=1e-5), float(jnp.max(jnp.abs(y - ref)))

    # Larger / ragged batch check (multi-step grid + partial last block).
    key, xk2 = jax.random.split(key)
    batch2 = 1000
    x2 = jax.random.normal(xk2, (batch2, input_dim), jnp.float32)
    y2 = nn_forward(x2, params)
    jax.block_until_ready(y2)
    ref2 = _reference(x2, params)
    assert y2.shape == (batch2,)
    assert jnp.allclose(y2, ref2, atol=2e-5, rtol=1e-5), float(jnp.max(jnp.abs(y2 - ref2)))

    print("KERNEL_OK")
</pallas_src>

<mosaic_0001>
module attributes {stable_mosaic.version = 11 : i64} {
  func.func @mlp_kernel(%arg0: i32, %arg1: memref<16x32xf32, #tpu.memory_space<vmem>>, %arg2: memref<64x32xf32, #tpu.memory_space<vmem>>, %arg3: memref<64x1xf32, #tpu.memory_space<vmem>>, %arg4: memref<32x64xf32, #tpu.memory_space<vmem>>, %arg5: memref<32x1xf32, #tpu.memory_space<vmem>>, %arg6: memref<16x32xf32, #tpu.memory_space<vmem>>, %arg7: memref<16x1xf32, #tpu.memory_space<vmem>>, %arg8: memref<4x16xf32, #tpu.memory_space<vmem>>, %arg9: memref<4x1xf32, #tpu.memory_space<vmem>>, %arg10: memref<4x1xf32, #tpu.memory_space<vmem>>, %arg11: memref<1x1xf32, #tpu.memory_space<vmem>>, %arg12: memref<1x16xf32, #tpu.memory_space<vmem>>) attributes {dimension_semantics = [#tpu.dimension_semantics<parallel>], iteration_bounds = array<i64: 1>, scalar_prefetch = 0 : i64, scratch_operands = 0 : i64, tpu.core_type = #tpu.core_type<tc>, window_params = [{transform_indices = @transform_0, window_bounds = array<i64: 16, 32>}, {pipeline_mode = #tpu.pipeline_mode<synchronous>, transform_indices = @transform_1, window_bounds = array<i64: 64, 32>}, {pipeline_mode = #tpu.pipeline_mode<synchronous>, transform_indices = @transform_2, window_bounds = array<i64: 64, 1>}, {pipeline_mode = #tpu.pipeline_mode<synchronous>, transform_indices = @transform_3, window_bounds = array<i64: 32, 64>}, {pipeline_mode = #tpu.pipeline_mode<synchronous>, transform_indices = @transform_4, window_bounds = array<i64: 32, 1>}, {pipeline_mode = #tpu.pipeline_mode<synchronous>, transform_indices = @transform_5, window_bounds = array<i64: 16, 32>}, {pipeline_mode = #tpu.pipeline_mode<synchronous>, transform_indices = @transform_6, window_bounds = array<i64: 16, 1>}, {pipeline_mode = #tpu.pipeline_mode<synchronous>, transform_indices = @transform_7, window_bounds = array<i64: 4, 16>}, {pipeline_mode = #tpu.pipeline_mode<synchronous>, transform_indices = @transform_8, window_bounds = array<i64: 4, 1>}, {pipeline_mode = #tpu.pipeline_mode<synchronous>, transform_indices = @transform_9, window_bounds = array<i64: 4, 1>}, {pipeline_mode = #tpu.pipeline_mode<synchronous>, transform_indices = @transform_10, window_bounds = array<i64: 1, 1>}, {transform_indices = @transform_11, window_bounds = array<i64: 1, 16>}]} {
    %c0 = arith.constant 0 : index
    %c0_0 = arith.constant 0 : index
    %0 = vector.load %arg2[%c0, %c0_0] : memref<64x32xf32, #tpu.memory_space<vmem>>, vector<64x32xf32>
    %c0_1 = arith.constant 0 : index
    %c0_2 = arith.constant 0 : index
    %1 = vector.load %arg1[%c0_1, %c0_2] : memref<16x32xf32, #tpu.memory_space<vmem>>, vector<16x32xf32>
    %cst = arith.constant dense<0.000000e+00> : vector<64x16xf32>
    %2 = tpu.matmul %0, %1, %cst {dimension_numbers = #tpu.dot_dimension_numbers<[1], [1], [0], [0], [0, 0, 1, 0], [], []>} : vector<64x32xf32>, vector<16x32xf32>, vector<64x16xf32> -> vector<64x16xf32>
    %c0_3 = arith.constant 0 : index
    %c0_4 = arith.constant 0 : index
    %3 = vector.load %arg3[%c0_3, %c0_4] : memref<64x1xf32, #tpu.memory_space<vmem>>, vector<64x1xf32>
    %4 = vector.broadcast %3 : vector<64x1xf32> to vector<64x16xf32>
    %5 = arith.addf %2, %4 : vector<64x16xf32>
    %cst_5 = arith.constant 0.000000e+00 : f32
    %6 = vector.broadcast %cst_5 : f32 to vector<64x16xf32>
    %7 = arith.maximumf %5, %6 : vector<64x16xf32>
    %c0_6 = arith.constant 0 : index
    %c0_7 = arith.constant 0 : index
    %8 = vector.load %arg4[%c0_6, %c0_7] : memref<32x64xf32, #tpu.memory_space<vmem>>, vector<32x64xf32>
    %cst_8 = arith.constant dense<0.000000e+00> : vector<32x16xf32>
    %9 = tpu.matmul %8, %7, %cst_8 {dimension_numbers = #tpu.dot_dimension_numbers<[1], [0], [0], [1], [0, 0, 1, 1], [], []>} : vector<32x64xf32>, vector<64x16xf32>, vector<32x16xf32> -> vector<32x16xf32>
    %c0_9 = arith.constant 0 : index
    %c0_10 = arith.constant 0 : index
    %10 = vector.load %arg5[%c0_9, %c0_10] : memref<32x1xf32, #tpu.memory_space<vmem>>, vector<32x1xf32>
    %11 = vector.broadcast %10 : vector<32x1xf32> to vector<32x16xf32>
    %12 = arith.addf %9, %11 : vector<32x16xf32>
    %cst_11 = arith.constant 0.000000e+00 : f32
    %13 = vector.broadcast %cst_11 : f32 to vector<32x16xf32>
    %14 = arith.maximumf %12, %13 : vector<32x16xf32>
    %c0_12 = arith.constant 0 : index
    %c0_13 = arith.constant 0 : index
    %15 = vector.load %arg6[%c0_12, %c0_13] : memref<16x32xf32, #tpu.memory_space<vmem>>, vector<16x32xf32>
    %cst_14 = arith.constant dense<0.000000e+00> : vector<16x16xf32>
    %16 = tpu.matmul %15, %14, %cst_14 {dimension_numbers = #tpu.dot_dimension_numbers<[1], [0], [0], [1], [0, 0, 1, 1], [], []>} : vector<16x32xf32>, vector<32x16xf32>, vector<16x16xf32> -> vector<16x16xf32>
    %c0_15 = arith.constant 0 : index
    %c0_16 = arith.constant 0 : index
    %17 = vector.load %arg7[%c0_15, %c0_16] : memref<16x1xf32, #tpu.memory_space<vmem>>, vector<16x1xf32>
    %18 = vector.broadcast %17 : vector<16x1xf32> to vector<16x16xf32>
    %19 = arith.addf %16, %18 : vector<16x16xf32>
    %cst_17 = arith.constant 0.000000e+00 : f32
    %20 = vector.broadcast %cst_17 : f32 to vector<16x16xf32>
    %21 = arith.maximumf %19, %20 : vector<16x16xf32>
    %c0_18 = arith.constant 0 : index
    %c0_19 = arith.constant 0 : index
    %22 = vector.load %arg8[%c0_18, %c0_19] : memref<4x16xf32, #tpu.memory_space<vmem>>, vector<4x16xf32>
    %cst_20 = arith.constant dense<0.000000e+00> : vector<4x16xf32>
    %23 = tpu.matmul %22, %21, %cst_20 {dimension_numbers = #tpu.dot_dimension_numbers<[1], [0], [0], [1], [0, 0, 1, 1], [], []>} : vector<4x16xf32>, vector<16x16xf32>, vector<4x16xf32> -> vector<4x16xf32>
    %c0_21 = arith.constant 0 : index
    %c0_22 = arith.constant 0 : index
    %24 = vector.load %arg9[%c0_21, %c0_22] : memref<4x1xf32, #tpu.memory_space<vmem>>, vector<4x1xf32>
    %25 = vector.broadcast %24 : vector<4x1xf32> to vector<4x16xf32>
    %26 = arith.addf %23, %25 : vector<4x16xf32>
    %cst_23 = arith.constant 0.000000e+00 : f32
    %27 = vector.broadcast %cst_23 : f32 to vector<4x16xf32>
    %28 = arith.maximumf %26, %27 : vector<4x16xf32>
    %c0_24 = arith.constant 0 : index
    %c0_25 = arith.constant 0 : index
    %29 = vector.load %arg10[%c0_24, %c0_25] : memref<4x1xf32, #tpu.memory_space<vmem>>, vector<4x1xf32>
    %30 = vector.broadcast %29 : vector<4x1xf32> to vector<4x16xf32>
    %31 = arith.mulf %30, %28 : vector<4x16xf32>
    %cst_26 = arith.constant dense<0.000000e+00> : vector<16xf32>
    %32 = vector.multi_reduction <add>, %31, %cst_26 [0] : vector<4x16xf32> to vector<16xf32>
    %33 = vector.shape_cast %32 : vector<16xf32> to vector<1x16xf32>
    %c0_27 = arith.constant 0 : index
    %c0_28 = arith.constant 0 : index
    %34 = vector.load %arg11[%c0_27, %c0_28] : memref<1x1xf32, #tpu.memory_space<vmem>>, vector<1x1xf32>
    %35 = vector.broadcast %34 : vector<1x1xf32> to vector<1x16xf32>
    %36 = arith.addf %33, %35 : vector<1x16xf32>
    %c0_29 = arith.constant 0 : index
    %c0_30 = arith.constant 0 : index
    %37 = vector.load %arg12[%c0_29, %c0_30] : memref<1x16xf32, #tpu.memory_space<vmem>>, vector<1x16xf32>
    tpu.vector_store %arg12[%c0_29, %c0_30], %36 {strides = array<i32>} : memref<1x16xf32, #tpu.memory_space<vmem>>, vector<1x16xf32>,
    return
  }
  func.func @transform_0(%arg0: i32) -> (i32, i32) {
    %c0_i32 = arith.constant 0 : i32
    %c0_i32_0 = arith.constant 0 : i32
    return %arg0, %c0_i32 : i32, i32
  }
  func.func @transform_1(%arg0: i32) -> (i32, i32) {
    %c0_i32 = arith.constant 0 : i32
    %c0_i32_0 = arith.constant 0 : i32
    %c0_i32_1 = arith.constant 0 : i32
    return %c0_i32, %c0_i32_0 : i32, i32
  }
  func.func @transform_2(%arg0: i32) -> (i32, i32) {
    %c0_i32 = arith.constant 0 : i32
    %c0_i32_0 = arith.constant 0 : i32
    %c0_i32_1 = arith.constant 0 : i32
    return %c0_i32, %c0_i32_0 : i32, i32
  }
  func.func @transform_3(%arg0: i32) -> (i32, i32) {
    %c0_i32 = arith.constant 0 : i32
    %c0_i32_0 = arith.constant 0 : i32
    %c0_i32_1 = arith.constant 0 : i32
    return %c0_i32, %c0_i32_0 : i32, i32
  }
  func.func @transform_4(%arg0: i32) -> (i32, i32) {
    %c0_i32 = arith.constant 0 : i32
    %c0_i32_0 = arith.constant 0 : i32
    %c0_i32_1 = arith.constant 0 : i32
    return %c0_i32, %c0_i32_0 : i32, i32
  }
  func.func @transform_5(%arg0: i32) -> (i32, i32) {
    %c0_i32 = arith.constant 0 : i32
    %c0_i32_0 = arith.constant 0 : i32
    %c0_i32_1 = arith.constant 0 : i32
    return %c0_i32, %c0_i32_0 : i32, i32
  }
  func.func @transform_6(%arg0: i32) -> (i32, i32) {
    %c0_i32 = arith.constant 0 : i32
    %c0_i32_0 = arith.constant 0 : i32
    %c0_i32_1 = arith.constant 0 : i32
    return %c0_i32, %c0_i32_0 : i32, i32
  }
  func.func @transform_7(%arg0: i32) -> (i32, i32) {
    %c0_i32 = arith.constant 0 : i32
    %c0_i32_0 = arith.constant 0 : i32
    %c0_i32_1 = arith.constant 0 : i32
    return %c0_i32, %c0_i32_0 : i32, i32
  }
  func.func @transform_8(%arg0: i32) -> (i32, i32) {
    %c0_i32 = arith.constant 0 : i32
    %c0_i32_0 = arith.constant 0 : i32
    %c0_i32_1 = arith.constant 0 : i32
    return %c0_i32, %c0_i32_0 : i32, i32
  }
  func.func @transform_9(%arg0: i32) -> (i32, i32) {
    %c0_i32 = arith.constant 0 : i32
    %c0_i32_0 = arith.constant 0 : i32
    %c0_i32_1 = arith.constant 0 : i32
    return %c0_i32, %c0_i32_0 : i32, i32
  }
  func.func @transform_10(%arg0: i32) -> (i32, i32) {
    %c0_i32 = arith.constant 0 : i32
    %c0_i32_0 = arith.constant 0 : i32
    %c0_i32_1 = arith.constant 0 : i32
    return %c0_i32, %c0_i32_0 : i32, i32
  }
  func.func @transform_11(%arg0: i32) -> (i32, i32) {
    %c0_i32 = arith.constant 0 : i32
    %c0_i32_0 = arith.constant 0 : i32
    return %c0_i32, %arg0 : i32, i32
  }
}

</mosaic_0001>

<llo_original>
// kernel: nn_forward.1
$region0: #{nn_forward.1}
  #allocation0 [shape = 'u32[]', space=smem, size = 0x4, offset = 0x4, fixed_abs, tag = 'smem constant byte address 0x4 - core index']
  #allocation1 [shape = 'u32[144,128]{1,0:T(1,128)}', space=vmem, size = 0x12000, scoped, tag = 'internal scratch']
  #allocation2 [shape = 'f32[1,1]{1,0:T(1,128)S(1)}', space=vmem, size = 0x200, scoped, tag = 'scoped memory for nn_forward.1']
  %s0 = inlined_call_operand.vmem [shape: f32[16,32], index: 0, kind: input, shape index: {}]
  %s1 = inlined_call_operand.vmem [shape: f32[64,32], index: 1, kind: input, shape index: {}]
  %s2 = inlined_call_operand.vmem [shape: f32[64,1], index: 2, kind: input, shape index: {}]
  %s3 = inlined_call_operand.vmem [shape: f32[32,64], index: 3, kind: input, shape index: {}]
  %s4 = inlined_call_operand.vmem [shape: f32[32,1], index: 4, kind: input, shape index: {}]
  %s5 = inlined_call_operand.vmem [shape: f32[16,32], index: 5, kind: input, shape index: {}]
  %s6 = inlined_call_operand.vmem [shape: f32[16,1], index: 6, kind: input, shape index: {}]
  %s7 = inlined_call_operand.vmem [shape: f32[4,16], index: 7, kind: input, shape index: {}]
  %s8 = inlined_call_operand.vmem [shape: f32[4,1], index: 8, kind: input, shape index: {}]
  %s9 = inlined_call_operand.vmem [shape: f32[4,1], index: 9, kind: input, shape index: {}]
  %s10 = inlined_call_operand.<no memory space> [shape: f32[1,1], index: 10, kind: input, shape index: {}]
  %s11 = inlined_call_operand.hbm [shape: f32[1,16], index: 11, kind: output, shape index: {}]
  %s12 = sld [smem:[#allocation0]]
  $region54: #{nn_forward.1} parent=0
    _
  %s14 = ssub.s32 1, %s12
  %s15 = scalar_select 0, %s14, %s12
  %v16 = vstv %s10
  %17 = vst [vmem:[#allocation2] sm:$0x1] %v16
  $region1: #{nn_forward.1} parent=0
    #allocation3 [shape = 'u8[512]{0}', space=vmem, size = 0x400, scoped, tag = 'output window, operand 0, single buffered']
    #allocation4 [shape = 's32[1]{0}', space=sflag, size = 0x4, scoped, tag = 'scoped memory for nn_forward.1']
    %18 = vsyncpa [#allocation4], 0
    // Predicated region
    $region2: #{nn_forward.1} parent=1 // pred_check
      _
    $region3: #{nn_forward.1} parent=1 // pred_check_branch
      %20 = sbr.rel (0) target = $region5
    $region4: #{nn_forward.1} parent=1 // pred_region
      _
    $region5: #{nn_forward.1} parent=1 // pred_fallthru
      _
    // Predicated region
    $region6: #{nn_forward.1} parent=1 // pred_check
      _
    $region7: #{nn_forward.1} parent=1 // pred_check_branch
      %22 = sbr.rel (0) target = $region9
    $region8: #{nn_forward.1} parent=1 // pred_region
      _
    $region9: #{nn_forward.1} parent=1 // pred_fallthru
      _
    // Predicated region
    $region10: #{nn_forward.1} parent=1 // pred_check
      _
    $region11: #{nn_forward.1} parent=1 // pred_check_branch
      %24 = sbr.rel (0) target = $region13
    $region12: #{nn_forward.1} parent=1 // pred_region
      _
    $region13: #{nn_forward.1} parent=1 // pred_fallthru
      _
    // Predicated region
    $region14: #{nn_forward.1} parent=1 // pred_check
      _
    $region15: #{nn_forward.1} parent=1 // pred_check_branch
      %26 = sbr.rel (0) target = $region17
    $region16: #{nn_forward.1} parent=1 // pred_region
      _
    $region17: #{nn_forward.1} parent=1 // pred_fallthru
      _
    // Predicated region
    $region18: #{nn_forward.1} parent=1 // pred_check
      _
    $region19: #{nn_forward.1} parent=1 // pred_check_branch
      %28 = sbr.rel (0) target = $region21
    $region20: #{nn_forward.1} parent=1 // pred_region
      _
    $region21: #{nn_forward.1} parent=1 // pred_fallthru
      _
    // Predicated region
    $region22: #{nn_forward.1} parent=1 // pred_check
      _
    $region23: #{nn_forward.1} parent=1 // pred_check_branch
      %30 = sbr.rel (0) target = $region25
    $region24: #{nn_forward.1} parent=1 // pred_region
      _
    $region25: #{nn_forward.1} parent=1 // pred_fallthru
      _
    // Predicated region
    $region26: #{nn_forward.1} parent=1 // pred_check
      _
    $region27: #{nn_forward.1} parent=1 // pred_check_branch
      %32 = sbr.rel (0) target = $region29
    $region28: #{nn_forward.1} parent=1 // pred_region
      _
    $region29: #{nn_forward.1} parent=1 // pred_fallthru
      _
    // Predicated region
    $region30: #{nn_forward.1} parent=1 // pred_check
      _
    $region31: #{nn_forward.1} parent=1 // pred_check_branch
      %34 = sbr.rel (0) target = $region33
    $region32: #{nn_forward.1} parent=1 // pred_region
      _
    $region33: #{nn_forward.1} parent=1 // pred_fallthru
      _
    // Predicated region
    $region34: #{nn_forward.1} parent=1 // pred_check
      _
    $region35: #{nn_forward.1} parent=1 // pred_check_branch
      %36 = sbr.rel (0) target = $region37
    $region36: #{nn_forward.1} parent=1 // pred_region
      _
    $region37: #{nn_forward.1} parent=1 // pred_fallthru
      _
    // Predicated region
    $region38: #{nn_forward.1} parent=1 // pred_check
      _
    $region39: #{nn_forward.1} parent=1 // pred_check_branch
      %38 = sbr.rel (0) target = $region41
    $region40: #{nn_forward.1} parent=1 // pred_region
      _
    $region41: #{nn_forward.1} parent=1 // pred_fallthru
      _
    // Predicated region
    $region42: #{nn_forward.1} parent=1 // pred_check
      _
    $region43: #{nn_forward.1} parent=1 // pred_check_branch
      %40 = sbr.rel (0) target = $region45
    $region44: #{nn_forward.1} parent=1 // pred_region
      _
    $region45: #{nn_forward.1} parent=1 // pred_fallthru
      _
    %v41 = vld [vmem:[%s1] sm:$0xff]
    %v42 = vld [vmem:[%s1 + $0x8] sm:$0xff]
    %v43 = vld [vmem:[%s1 + $0x10] sm:$0xff]
    %v44 = vld [vmem:[%s1 + $0x18] sm:$0xff]
    %v45 = vld [vmem:[%s1 + $0x20] sm:$0xff]
    %v46 = vld [vmem:[%s1 + $0x28] sm:$0xff]
    %v47 = vld [vmem:[%s1 + $0x30] sm:$0xff]
    %v48 = vld [vmem:[%s1 + $0x38] sm:$0xff]
    %v49 = vld [vmem:[%s0] sm:$0xff]
    %v50 = vld [vmem:[%s0 + $0x8] sm:$0xff]
    %v51 = vld [vmem:[%s2] sm:$0xff]
    %v52 = vld [vmem:[%s2 + $0x8] sm:$0xff]
    %v53 = vld [vmem:[%s2 + $0x10] sm:$0xff]
    %v54 = vld [vmem:[%s2 + $0x18] sm:$0xff]
    %v55 = vld [vmem:[%s2 + $0x20] sm:$0xff]
    %v56 = vld [vmem:[%s2 + $0x28] sm:$0xff]
    %v57 = vld [vmem:[%s2 + $0x30] sm:$0xff]
    %v58 = vld [vmem:[%s2 + $0x38] sm:$0xff]
    %60 = vset.pattern.permute.xlu0 0
    %61 = vperm.xlu0 %60, %v51
    %v62 = vpop.permute.xlu0 %61
    %65 = vset.pattern.permute.xlu0 0
    %66 = vperm.xlu0 %65, %v52
    %v67 = vpop.permute.xlu0 %66
    %70 = vset.pattern.permute.xlu0 0
    %71 = vperm.xlu0 %70, %v53
    %v72 = vpop.permute.xlu0 %71
    %75 = vset.pattern.permute.xlu0 0
    %76 = vperm.xlu0 %75, %v54
    %v77 = vpop.permute.xlu0 %76
    %80 = vset.pattern.permute.xlu0 0
    %81 = vperm.xlu0 %80, %v55
    %v82 = vpop.permute.xlu0 %81
    %85 = vset.pattern.permute.xlu0 0
    %86 = vperm.xlu0 %85, %v56
    %v87 = vpop.permute.xlu0 %86
    %90 = vset.pattern.permute.xlu0 0
    %91 = vperm.xlu0 %90, %v57
    %v92 = vpop.permute.xlu0 %91
    %95 = vset.pattern.permute.xlu0 0
    %96 = vperm.xlu0 %95, %v58
    %v97 = vpop.permute.xlu0 %96
    %vm99 = vcmask 261120
    %v101 = vsel %vm99, %v41, 0
    %v104 = vsel %vm99, %v42, 0
    %v107 = vsel %vm99, %v43, 0
    %v110 = vsel %vm99, %v44, 0
    %v113 = vsel %vm99, %v45, 0
    %v116 = vsel %vm99, %v46, 0
    %v119 = vsel %vm99, %v47, 0
    %v122 = vsel %vm99, %v48, 0
    %v125 = vsel %vm99, %v49, 0
    %v128 = vsel %vm99, %v50, 0
    %130 = vmatprep.subr.mxu0 0.0
    %131 = vmatpush1.xpose.msra.mxu0 0.0
    %132 = vmatprep.subr.mxu0 0.0
    %133 = vmatpush1.xpose.msra.mxu0 0.0
    %134 = vmatprep.subr.mxu0 0.0
    %135 = vmatpush1.xpose.msra.mxu0 0.0
    %136 = vmatprep.subr.mxu0 0.0
    %137 = vmatpush1.xpose.msra.mxu0 0.0
    %138 = vmatprep.subr.mxu0 0.0
    %139 = vmatpush1.xpose.msra.mxu0 0.0
    %140 = vmatprep.subr.mxu0 0.0
    %141 = vmatpush1.xpose.msra.mxu0 0.0
    %142 = vmatprep.subr.mxu0 0.0
    %143 = vmatpush1.xpose.msra.mxu0 0.0
    %144 = vmatprep.subr.mxu0 0.0
    %145 = vmatpush1.xpose.msra.mxu0 0.0
    %146 = vmatprep.subr.mxu0 0.0
    %147 = vmatpush1.xpose.msra.mxu0 0.0
    %148 = vmatprep.subr.mxu0 0.0
    %149 = vmatpush1.xpose.msra.mxu0 0.0
    %150 = vmatprep.subr.mxu0 0.0
    %151 = vmatpush1.xpose.msra.mxu0 0.0
    %152 = vmatprep.subr.mxu0 0.0
    %153 = vmatpush1.xpose.msra.mxu0 0.0
    %154 = vmatprep.subr.mxu0 0.0
    %155 = vmatpush1.xpose.msra.mxu0 0.0
    %156 = vmatprep.subr.mxu0 0.0
    %157 = vmatpush1.xpose.msra.mxu0 0.0
    %158 = vmatprep.subr.mxu0 0.0
    %159 = vmatpush1.xpose.msra.mxu0 %v128
    %160 = vmatprep.subr.mxu0 0.0
    %161 = vmatpush1.xpose.msra.mxu0 %v125
    %162 = vmatprep.subr.mxu0 0.0
    %163 = vmatpush2.xpose.msra.mxu0 0.0
    %164 = vmatprep.subr.mxu0 0.0
    %165 = vmatpush2.xpose.msra.mxu0 0.0
    %166 = vmatprep.subr.mxu0 0.0
    %167 = vmatpush2.xpose.msra.mxu0 0.0
    %168 = vmatprep.subr.mxu0 0.0
    %169 = vmatpush2.xpose.msra.mxu0 0.0
    %170 = vmatprep.subr.mxu0 0.0
    %171 = vmatpush2.xpose.msra.mxu0 0.0
    %172 = vmatprep.subr.mxu0 0.0
    %173 = vmatpush2.xpose.msra.mxu0 0.0
    %174 = vmatprep.subr.mxu0 0.0
    %175 = vmatpush2.xpose.msra.mxu0 0.0
    %176 = vmatprep.subr.mxu0 0.0
    %177 = vmatpush2.xpose.msra.mxu0 0.0
    %178 = vmatprep.subr.mxu0 0.0
    %179 = vmatpush2.xpose.msra.mxu0 0.0
    %180 = vmatprep.subr.mxu0 0.0
    %181 = vmatpush2.xpose.msra.mxu0 0.0
    %182 = vmatprep.subr.mxu0 0.0
    %183 = vmatpush2.xpose.msra.mxu0 0.0
    %184 = vmatprep.subr.mxu0 0.0
    %185 = vmatpush2.xpose.msra.mxu0 0.0
    %186 = vmatprep.subr.mxu0 0.0
    %187 = vmatpush2.xpose.msra.mxu0 0.0
    %188 = vmatprep.subr.mxu0 0.0
    %189 = vmatpush2.xpose.msra.mxu0 0.0
    %190 = vmatprep.subr.mxu0 0.0
    %191 = vmatpush2.xpose.msra.mxu0 0.0
    %192 = vmatprep.subr.mxu0 0.0
    %193 = vmatpush2.xpose.msra.mxu0 0.0
    %194 = vmatprep.mubr.f32.mxu0 0.0
    %195 = vmatmul.mubr.f32.gmra.mxu0 %v101
    %v196 = vpop.f32.mrf.mxu0
    %v197 = vadd.f32 %v62, %v196
    %v198 = vpop.f32.mrf.mxu0
    %199 = vmatprep.mubr.f32.mxu0 0.0
    %200 = vmatmul.mubr.f32.gmra.mxu0 %v104
    %v201 = vpop.f32.mrf.mxu0
    %v202 = vadd.f32 %v67, %v201
    %v203 = vpop.f32.mrf.mxu0
    %204 = vmatprep.mubr.f32.mxu0 0.0
    %205 = vmatmul.mubr.f32.gmra.mxu0 %v107
    %v206 = vpop.f32.mrf.mxu0
    %v207 = vadd.f32 %v72, %v206
    %v208 = vpop.f32.mrf.mxu0
    %209 = vmatprep.mubr.f32.mxu0 0.0
    %210 = vmatmul.mubr.f32.gmra.mxu0 %v110
    %v211 = vpop.f32.mrf.mxu0
    %v212 = vadd.f32 %v77, %v211
    %v213 = vpop.f32.mrf.mxu0
    %214 = vmatprep.mubr.f32.mxu0 0.0
    %215 = vmatmul.mubr.f32.gmra.mxu0 %v113
    %v216 = vpop.f32.mrf.mxu0
    %v217 = vadd.f32 %v82, %v216
    %v218 = vpop.f32.mrf.mxu0
    %219 = vmatprep.mubr.f32.mxu0 0.0
    %220 = vmatmul.mubr.f32.gmra.mxu0 %v116
    %v221 = vpop.f32.mrf.mxu0
    %v222 = vadd.f32 %v87, %v221
    %v223 = vpop.f32.mrf.mxu0
    %224 = vmatprep.mubr.f32.mxu0 0.0
    %225 = vmatmul.mubr.f32.gmra.mxu0 %v119
    %v226 = vpop.f32.mrf.mxu0
    %v227 = vadd.f32 %v92, %v226
    %v228 = vpop.f32.mrf.mxu0
    %229 = vmatprep.mubr.f32.mxu0 0.0
    %230 = vmatmul.mubr.f32.gmra.mxu0 %v122
    %v231 = vpop.f32.mrf.mxu0
    %v232 = vadd.f32 %v97, %v231
    %v233 = vpop.f32.mrf.mxu0
    %234 = vdwg.mxu0
    %v235 = vmax.f32 %v197, 0.0
    %v236 = vmax.f32 %v202, 0.0
    %v237 = vmax.f32 %v207, 0.0
    %v238 = vmax.f32 %v212, 0.0
    %v239 = vmax.f32 %v217, 0.0
    %v240 = vmax.f32 %v222, 0.0
    %v241 = vmax.f32 %v227, 0.0
    %v242 = vmax.f32 %v232, 0.0
    %v243 = vld [vmem:[%s3] sm:$0xff]
    %v244 = vld [vmem:[%s3 + $0x8] sm:$0xff]
    %v245 = vld [vmem:[%s3 + $0x10] sm:$0xff]
    %v246 = vld [vmem:[%s3 + $0x18] sm:$0xff]
    %v247 = vld [vmem:[%s4] sm:$0xff]
    %v248 = vld [vmem:[%s4 + $0x8] sm:$0xff]
    %v249 = vld [vmem:[%s4 + $0x10] sm:$0xff]
    %v250 = vld [vmem:[%s4 + $0x18] sm:$0xff]
    %252 = vset.pattern.permute.xlu0 0
    %253 = vperm.xlu0 %252, %v247
    %v254 = vpop.permute.xlu0 %253
    %257 = vset.pattern.permute.xlu0 0
    %258 = vperm.xlu0 %257, %v248
    %v259 = vpop.permute.xlu0 %258
    %262 = vset.pattern.permute.xlu0 0
    %263 = vperm.xlu0 %262, %v249
    %v264 = vpop.permute.xlu0 %263
    %267 = vset.pattern.permute.xlu0 0
    %268 = vperm.xlu0 %267, %v250
    %v269 = vpop.permute.xlu0 %268
    %vm271 = vcmask 523264
    %v273 = vsel %vm271, %v243, 0
    %v276 = vsel %vm271, %v244, 0
    %v279 = vsel %vm271, %v245, 0
    %v282 = vsel %vm271, %v246, 0
    %284 = vmatprep.subr.mxu0 0.0
    %285 = vmatpush1.msra.mxu0 0.0
    %286 = vmatprep.subr.mxu0 0.0
    %287 = vmatpush1.msra.mxu0 0.0
    %288 = vmatprep.subr.mxu0 0.0
    %289 = vmatpush1.msra.mxu0 0.0
    %290 = vmatprep.subr.mxu0 0.0
    %291 = vmatpush1.msra.mxu0 0.0
    %292 = vmatprep.subr.mxu0 0.0
    %293 = vmatpush1.msra.mxu0 0.0
    %294 = vmatprep.subr.mxu0 0.0
    %295 = vmatpush1.msra.mxu0 0.0
    %296 = vmatprep.subr.mxu0 0.0
    %297 = vmatpush1.msra.mxu0 0.0
    %298 = vmatprep.subr.mxu0 0.0
    %299 = vmatpush1.msra.mxu0 0.0
    %300 = vmatprep.subr.mxu0 0.0
    %301 = vmatpush1.msra.mxu0 %v242
    %302 = vmatprep.subr.mxu0 0.0
    %303 = vmatpush1.msra.mxu0 %v241
    %304 = vmatprep.subr.mxu0 0.0
    %305 = vmatpush1.msra.mxu0 %v240
    %306 = vmatprep.subr.mxu0 0.0
    %307 = vmatpush1.msra.mxu0 %v239
    %308 = vmatprep.subr.mxu0 0.0
    %309 = vmatpush1.msra.mxu0 %v238
    %310 = vmatprep.subr.mxu0 0.0
    %311 = vmatpush1.msra.mxu0 %v237
    %312 = vmatprep.subr.mxu0 0.0
    %313 = vmatpush1.msra.mxu0 %v236
    %314 = vmatprep.subr.mxu0 0.0
    %315 = vmatpush1.msra.mxu0 %v235
    %316 = vmatprep.subr.mxu0 0.0
    %317 = vmatpush2.msra.mxu0 0.0
    %318 = vmatprep.subr.mxu0 0.0
    %319 = vmatpush2.msra.mxu0 0.0
    %320 = vmatprep.subr.mxu0 0.0
    %321 = vmatpush2.msra.mxu0 0.0
    %322 = vmatprep.subr.mxu0 0.0
    %323 = vmatpush2.msra.mxu0 0.0
    %324 = vmatprep.subr.mxu0 0.0
    %325 = vmatpush2.msra.mxu0 0.0
    %326 = vmatprep.subr.mxu0 0.0
    %327 = vmatpush2.msra.mxu0 0.0
    %328 = vmatprep.subr.mxu0 0.0
    %329 = vmatpush2.msra.mxu0 0.0
    %330 = vmatprep.subr.mxu0 0.0
    %331 = vmatpush2.msra.mxu0 0.0
    %332 = vmatprep.subr.mxu0 0.0
    %333 = vmatpush2.msra.mxu0 0.0
    %334 = vmatprep.subr.mxu0 0.0
    %335 = vmatpush2.msra.mxu0 0.0
    %336 = vmatprep.subr.mxu0 0.0
    %337 = vmatpush2.msra.mxu0 0.0
    %338 = vmatprep.subr.mxu0 0.0
    %339 = vmatpush2.msra.mxu0 0.0
    %340 = vmatprep.subr.mxu0 0.0
    %341 = vmatpush2.msra.mxu0 0.0
    %342 = vmatprep.subr.mxu0 0.0
    %343 = vmatpush2.msra.mxu0 0.0
    %344 = vmatprep.subr.mxu0 0.0
    %345 = vmatpush2.msra.mxu0 0.0
    %346 = vmatprep.subr.mxu0 0.0
    %347 = vmatpush2.msra.mxu0 0.0
    %348 = vmatprep.mubr.f32.mxu0 0.0
    %349 = vmatmul.mubr.f32.gmra.mxu0 %v273
    %v350 = vpop.f32.mrf.mxu0
    %v351 = vadd.f32 %v254, %v350
    %v352 = vpop.f32.mrf.mxu0
    %353 = vmatprep.mubr.f32.mxu0 0.0
    %354 = vmatmul.mubr.f32.gmra.mxu0 %v276
    %v355 = vpop.f32.mrf.mxu0
    %v356 = vadd.f32 %v259, %v355
    %v357 = vpop.f32.mrf.mxu0
    %358 = vmatprep.mubr.f32.mxu0 0.0
    %359 = vmatmul.mubr.f32.gmra.mxu0 %v279
    %v360 = vpop.f32.mrf.mxu0
    %v361 = vadd.f32 %v264, %v360
    %v362 = vpop.f32.mrf.mxu0
    %363 = vmatprep.mubr.f32.mxu0 0.0
    %364 = vmatmul.mubr.f32.gmra.mxu0 %v282
    %v365 = vpop.f32.mrf.mxu0
    %v366 = vadd.f32 %v269, %v365
    %v367 = vpop.f32.mrf.mxu0
    %368 = vdwg.mxu0
    %v369 = vmax.f32 %v351, 0.0
    %v370 = vmax.f32 %v356, 0.0
    %v371 = vmax.f32 %v361, 0.0
    %v372 = vmax.f32 %v366, 0.0
    %v373 = vld [vmem:[%s5] sm:$0xff]
    %v374 = vld [vmem:[%s5 + $0x8] sm:$0xff]
    %v375 = vld [vmem:[%s6] sm:$0xff]
    %v376 = vld [vmem:[%s6 + $0x8] sm:$0xff]
    %378 = vset.pattern.permute.xlu0 0
    %379 = vperm.xlu0 %378, %v375
    %v380 = vpop.permute.xlu0 %379
    %383 = vset.pattern.permute.xlu0 0
    %384 = vperm.xlu0 %383, %v376
    %v385 = vpop.permute.xlu0 %384
    %v388 = vsel %vm99, %v373, 0
    %v391 = vsel %vm99, %v374, 0
    %393 = vmatprep.subr.mxu0 0.0
    %394 = vmatpush1.msra.mxu0 0.0
    %395 = vmatprep.subr.mxu0 0.0
    %396 = vmatpush1.msra.mxu0 0.0
    %397 = vmatprep.subr.mxu0 0.0
    %398 = vmatpush1.msra.mxu0 0.0
    %399 = vmatprep.subr.mxu0 0.0
    %400 = vmatpush1.msra.mxu0 0.0
    %401 = vmatprep.subr.mxu0 0.0
    %402 = vmatpush1.msra.mxu0 0.0
    %403 = vmatprep.subr.mxu0 0.0
    %404 = vmatpush1.msra.mxu0 0.0
    %405 = vmatprep.subr.mxu0 0.0
    %406 = vmatpush1.msra.mxu0 0.0
    %407 = vmatprep.subr.mxu0 0.0
    %408 = vmatpush1.msra.mxu0 0.0
    %409 = vmatprep.subr.mxu0 0.0
    %410 = vmatpush1.msra.mxu0 0.0
    %411 = vmatprep.subr.mxu0 0.0
    %412 = vmatpush1.msra.mxu0 0.0
    %413 = vmatprep.subr.mxu0 0.0
    %414 = vmatpush1.msra.mxu0 0.0
    %415 = vmatprep.subr.mxu0 0.0
    %416 = vmatpush1.msra.mxu0 0.0
    %417 = vmatprep.subr.mxu0 0.0
    %418 = vmatpush1.msra.mxu0 %v372
    %419 = vmatprep.subr.mxu0 0.0
    %420 = vmatpush1.msra.mxu0 %v371
    %421 = vmatprep.subr.mxu0 0.0
    %422 = vmatpush1.msra.mxu0 %v370
    %423 = vmatprep.subr.mxu0 0.0
    %424 = vmatpush1.msra.mxu0 %v369
    %425 = vmatprep.subr.mxu0 0.0
    %426 = vmatpush2.msra.mxu0 0.0
    %427 = vmatprep.subr.mxu0 0.0
    %428 = vmatpush2.msra.mxu0 0.0
    %429 = vmatprep.subr.mxu0 0.0
    %430 = vmatpush2.msra.mxu0 0.0
    %431 = vmatprep.subr.mxu0 0.0
    %432 = vmatpush2.msra.mxu0 0.0
    %433 = vmatprep.subr.mxu0 0.0
    %434 = vmatpush2.msra.mxu0 0.0
    %435 = vmatprep.subr.mxu0 0.0
    %436 = vmatpush2.msra.mxu0 0.0
    %437 = vmatprep.subr.mxu0 0.0
    %438 = vmatpush2.msra.mxu0 0.0
    %439 = vmatprep.subr.mxu0 0.0
    %440 = vmatpush2.msra.mxu0 0.0
    %441 = vmatprep.subr.mxu0 0.0
    %442 = vmatpush2.msra.mxu0 0.0
    %443 = vmatprep.subr.mxu0 0.0
    %444 = vmatpush2.msra.mxu0 0.0
    %445 = vmatprep.subr.mxu0 0.0
    %446 = vmatpush2.msra.mxu0 0.0
    %447 = vmatprep.subr.mxu0 0.0
    %448 = vmatpush2.msra.mxu0 0.0
    %449 = vmatprep.subr.mxu0 0.0
    %450 = vmatpush2.msra.mxu0 0.0
    %451 = vmatprep.subr.mxu0 0.0
    %452 = vmatpush2.msra.mxu0 0.0
    %453 = vmatprep.subr.mxu0 0.0
    %454 = vmatpush2.msra.mxu0 0.0
    %455 = vmatprep.subr.mxu0 0.0
    %456 = vmatpush2.msra.mxu0 0.0
    %457 = vmatprep.mubr.f32.mxu0 0.0
    %458 = vmatmul.mubr.f32.gmra.mxu0 %v388
    %v459 = vpop.f32.mrf.mxu0
    %v460 = vadd.f32 %v380, %v459
    %v461 = vpop.f32.mrf.mxu0
    %462 = vmatprep.mubr.f32.mxu0 0.0
    %463 = vmatmul.mubr.f32.gmra.mxu0 %v391
    %v464 = vpop.f32.mrf.mxu0
    %v465 = vadd.f32 %v385, %v464
    %v466 = vpop.f32.mrf.mxu0
    %467 = vdwg.mxu0
    %v468 = vmax.f32 %v460, 0.0
    %v469 = vmax.f32 %v465, 0.0
    %v470 = vld [vmem:[%s7] sm:$0xf]
    %v471 = vld [vmem:[%s8] sm:$0xf]
    %473 = vset.pattern.permute.xlu0 0
    %474 = vperm.xlu0 %473, %v471
    %v475 = vpop.permute.xlu0 %474
    %vm477 = vcmask 130048
    %v479 = vsel %vm477, %v470, 0
    %481 = vmatprep.subr.mxu0 0.0
    %482 = vmatpush1.msra.mxu0 0.0
    %483 = vmatprep.subr.mxu0 0.0
    %484 = vmatpush1.msra.mxu0 0.0
    %485 = vmatprep.subr.mxu0 0.0
    %486 = vmatpush1.msra.mxu0 0.0
    %487 = vmatprep.subr.mxu0 0.0
    %488 = vmatpush1.msra.mxu0 0.0
    %489 = vmatprep.subr.mxu0 0.0
    %490 = vmatpush1.msra.mxu0 0.0
    %491 = vmatprep.subr.mxu0 0.0
    %492 = vmatpush1.msra.mxu0 0.0
    %493 = vmatprep.subr.mxu0 0.0
    %494 = vmatpush1.msra.mxu0 0.0
    %495 = vmatprep.subr.mxu0 0.0
    %496 = vmatpush1.msra.mxu0 0.0
    %497 = vmatprep.subr.mxu0 0.0
    %498 = vmatpush1.msra.mxu0 0.0
    %499 = vmatprep.subr.mxu0 0.0
    %500 = vmatpush1.msra.mxu0 0.0
    %501 = vmatprep.subr.mxu0 0.0
    %502 = vmatpush1.msra.mxu0 0.0
    %503 = vmatprep.subr.mxu0 0.0
    %504 = vmatpush1.msra.mxu0 0.0
    %505 = vmatprep.subr.mxu0 0.0
    %506 = vmatpush1.msra.mxu0 0.0
    %507 = vmatprep.subr.mxu0 0.0
    %508 = vmatpush1.msra.mxu0 0.0
    %509 = vmatprep.subr.mxu0 0.0
    %510 = vmatpush1.msra.mxu0 %v469
    %511 = vmatprep.subr.mxu0 0.0
    %512 = vmatpush1.msra.mxu0 %v468
    %513 = vmatprep.subr.mxu0 0.0
    %514 = vmatpush2.msra.mxu0 0.0
    %515 = vmatprep.subr.mxu0 0.0
    %516 = vmatpush2.msra.mxu0 0.0
    %517 = vmatprep.subr.mxu0 0.0
    %518 = vmatpush2.msra.mxu0 0.0
    %519 = vmatprep.subr.mxu0 0.0
    %520 = vmatpush2.msra.mxu0 0.0
    %521 = vmatprep.subr.mxu0 0.0
    %522 = vmatpush2.msra.mxu0 0.0
    %523 = vmatprep.subr.mxu0 0.0
    %524 = vmatpush2.msra.mxu0 0.0
    %525 = vmatprep.subr.mxu0 0.0
    %526 = vmatpush2.msra.mxu0 0.0
    %527 = vmatprep.subr.mxu0 0.0
    %528 = vmatpush2.msra.mxu0 0.0
    %529 = vmatprep.subr.mxu0 0.0
    %530 = vmatpush2.msra.mxu0 0.0
    %531 = vmatprep.subr.mxu0 0.0
    %532 = vmatpush2.msra.mxu0 0.0
    %533 = vmatprep.subr.mxu0 0.0
    %534 = vmatpush2.msra.mxu0 0.0
    %535 = vmatprep.subr.mxu0 0.0
    %536 = vmatpush2.msra.mxu0 0.0
    %537 = vmatprep.subr.mxu0 0.0
    %538 = vmatpush2.msra.mxu0 0.0
    %539 = vmatprep.subr.mxu0 0.0
    %540 = vmatpush2.msra.mxu0 0.0
    %541 = vmatprep.subr.mxu0 0.0
    %542 = vmatpush2.msra.mxu0 0.0
    %543 = vmatprep.subr.mxu0 0.0
    %544 = vmatpush2.msra.mxu0 0.0
    %545 = vmatprep.mubr.f32.mxu0 0.0
    %546 = vmatmul.mubr.f32.gmra.mxu0 %v479
    %v547 = vpop.f32.mrf.mxu0
    %v548 = vadd.f32 %v475, %v547
    %v549 = vpop.f32.mrf.mxu0
    %550 = vdwg.mxu0
    %v551 = vmax.f32 %v548, 0.0
    %v552 = vld [vmem:[%s9] sm:$0xf]
    %554 = vset.pattern.permute.xlu0 0
    %555 = vperm.xlu0 %554, %v552
    %v556 = vpop.permute.xlu0 %555
    %v558 = vmul.f32 %v556, %v551
    %vm559 = vcmask 125952
    %v560 = vsel %vm559, %v558, 0.0
    %v561 = vrot.slane %v560, 4
    %v562 = vadd.f32 %v560, %v561
    %v563 = vrot.slane %v562, 2
    %v564 = vadd.f32 %v562, %v563
    %v565 = vrot.slane %v564, 1
    %v566 = vadd.f32 %v564, %v565
    %v567 = vld [vmem:[#allocation2] sm:$0x1]
    %569 = vset.pattern.permute.xlu0 0
    %570 = vperm.xlu0 %569, %v567
    %v571 = vpop.permute.xlu0 %570
    %v573 = vlaneseq
    %v574 = vshrl.u32 %v573, 7
    %v575 = vsub.s32 0, %v574
    %v576 = vrot.slane %v571, %v575
    %v577 = vadd.f32 %v566, %v576
    %vm578 = vcmask 122880
    %579 = vst.msk [vmem:[#allocation3] sm:$0x1] %vm578, %v577
    // Predicated region
    $region46: #{nn_forward.1} parent=1 // pred_check
      _
    $region47: #{nn_forward.1} parent=1 // pred_check_branch
      %581 = sbr.rel (0) target = $region49
    $region48: #{nn_forward.1} parent=1 // pred_region
      %s583 = ssub.s32 16, 16
      %584 = vsyncadd [#allocation4], %s583
      %s586 = sshll.u32 [#allocation3], 4
      %s587 = int_to_ptr.vmem [resolvable:$true] %s586
      %589 = dma.vmem_to_hbm [thread:$0]  %s587, 16, %s11, [#allocation4]
    $region49: #{nn_forward.1} parent=1 // pred_fallthru
      _
    // Predicated region
    $region50: #{nn_forward.1} parent=1 // pred_check
      _
    $region51: #{nn_forward.1} parent=1 // pred_check_branch
      %591 = sbr.rel (0) target = $region53
    $region52: #{nn_forward.1} parent=1 // pred_region
      %592 = dma.done [#allocation4], 16
    $region53: #{nn_forward.1} parent=1 // pred_fallthru
      _
    %593 = vsyncpa [#allocation4], 1

</llo_original>
